<compile_context>
chip_gen: v7x
topology: tpu7x:2x2x1
jax: 0.10.0
libtpu: 0.0.40
codegen_flags: <defaults>
</compile_context>

<pallas_src>
import math

import jax
import jax.numpy as jnp
from jax.experimental import pallas as pl
from jax.experimental.pallas import tpu as pltpu


def _make_kernel(fold: int, seg: int):
    """Build the kernel for a folded layout: each row holds `fold` original
    batch rows of length `seg` (= original feature dim D), concatenated along
    the lane axis (L = fold * seg)."""

    def kernel(r1_ref, r2_ref, w_ref, b_ref, o1_ref, o2_ref):
        r1 = r1_ref[...]                            # (Bt, L), native dtype
        r2 = r2_ref[...]
        w = w_ref[...].astype(jnp.float32)          # (1, L)
        b = b_ref[0, 0]                             # scalar bias (SMEM, f32)

        # Score products in f32 (exact).  The final scale below re-uses the
        # native-dtype inputs, so no f32 copy of r1/r2 stays live for stores.
        p1 = r1.astype(jnp.float32) * w             # (Bt, L)
        p2 = r2.astype(jnp.float32) * w

        if fold == 1:
            s1 = jnp.tanh(jnp.sum(p1, axis=-1, keepdims=True) + b)   # (Bt, 1)
            s2 = jnp.tanh(jnp.sum(p2, axis=-1, keepdims=True) + b)
            # 2-way softmax == sigmoid; s1, s2 in [-1, 1] so exp never overflows.
            e = jnp.exp(s2 - s1)
            inv = pl.reciprocal(1.0 + e, approx=False)
            a1 = inv
            a2 = e * inv
            o1_ref[...] = (a1.astype(r1.dtype) * r1).astype(o1_ref.dtype)
            o2_ref[...] = (a2.astype(r2.dtype) * r2).astype(o2_ref.dtype)
        else:
            lane = jax.lax.broadcasted_iota(jnp.int32, p1.shape, 1)   # (Bt, L)
            a1_full = jnp.zeros_like(p1)
            a2_full = jnp.zeros_like(p2)
            for j in range(fold):                   # static unroll, fold <= 16
                m = (lane >= j * seg) & (lane < (j + 1) * seg)
                s1 = jnp.tanh(
                    jnp.sum(jnp.where(m, p1, 0.0), axis=-1, keepdims=True) + b)
                s2 = jnp.tanh(
                    jnp.sum(jnp.where(m, p2, 0.0), axis=-1, keepdims=True) + b)
                e = jnp.exp(s2 - s1)
                inv = pl.reciprocal(1.0 + e, approx=False)
                a1_full = jnp.where(m, inv, a1_full)        # broadcast (Bt,1)
                a2_full = jnp.where(m, e * inv, a2_full)
            o1_ref[...] = (a1_full.astype(r1.dtype) * r1).astype(o1_ref.dtype)
            o2_ref[...] = (a2_full.astype(r2.dtype) * r2).astype(o2_ref.dtype)

    return kernel


def _pick_block_rows(n_rows: int, row_bytes: int, target_bytes: int = 1 << 20) -> int:
    """Largest multiple-of-8 divisor of n_rows whose tile is <= ~target_bytes.

    ~1 MiB per streamed tile is large enough to sit near the HBM roofline on
    all generations, while 4 streams x 2 pipeline buffers (+ f32 temps) stays
    far below even v7x's 32 MiB scoped-VMEM default."""
    if n_rows <= 8:
        return n_rows
    tgt = max(8, min(n_rows, target_bytes // max(row_bytes, 1)))
    tgt -= tgt % 8
    tgt = max(tgt, 8)
    for cand in range(tgt, 7, -8):
        if n_rows % cand == 0:
            return cand
    return n_rows           # no multiple-of-8 divisor: fall back to one block


def hierarchical_attention(rep1, rep2, weight, bias, *, block_rows=None):
    """Pallas forward for HierarchicalAttention.

    rep1, rep2: (B, D)
    weight:     (1, D) or (D,)   (nn.Linear(in=D, out=1).weight)
    bias:       (1,) or (1, 1)
    Returns (out1, out2), both (B, D) in the input dtype.
    """
    B, D = rep1.shape
    assert rep2.shape == (B, D), "rep1/rep2 shape mismatch"

    # Lane-dense folding: pack `fold` batch rows into one row of length fold*D
    # (a multiple of 128 lanes) when D is narrower than a vreg.  The reshape
    # (B, D) -> (B//fold, fold*D) is free (contiguous, row-major).
    fold = 1
    if D < 128:
        f = 128 // math.gcd(D, 128)
        if B % f == 0:
            fold = f
    L = fold * D
    n_rows = B // fold

    r1f = rep1.reshape(n_rows, L)
    r2f = rep2.reshape(n_rows, L)
    w_tiled = jnp.tile(jnp.asarray(weight, jnp.float32).reshape(1, D), (1, fold))
    b_smem = jnp.asarray(bias, jnp.float32).reshape(1, 1)

    itemsize = jnp.dtype(rep1.dtype).itemsize
    if block_rows is None:
        block_rows = _pick_block_rows(n_rows, L * itemsize)
    if n_rows % block_rows != 0:
        raise ValueError(f"block_rows={block_rows} must divide {n_rows} (folded) rows")
    if block_rows != n_rows and block_rows % 8 != 0:
        raise ValueError("block_rows must be a multiple of 8 (sublane tiling) "
                         "unless it covers the whole (folded) batch")
    grid = (n_rows // block_rows,)

    batch_spec = pl.BlockSpec((block_rows, L), lambda i: (i, 0))
    weight_spec = pl.BlockSpec((1, L), lambda i: (0, 0))          # DMA'd once
    bias_spec = pl.BlockSpec(memory_space=pltpu.MemorySpace.SMEM)  # scalar read

    out_shape = (
        jax.ShapeDtypeStruct((n_rows, L), rep1.dtype),
        jax.ShapeDtypeStruct((n_rows, L), rep2.dtype),
    )

    o1f, o2f = pl.pallas_call(
        _make_kernel(fold, D),
        out_shape=out_shape,
        grid_spec=pltpu.PrefetchScalarGridSpec(
            num_scalar_prefetch=0,
            grid=grid,
            in_specs=[batch_spec, batch_spec, weight_spec, bias_spec],
            out_specs=[batch_spec, batch_spec],
        ),
        compiler_params=pltpu.CompilerParams(
            # Batch axis is embarrassingly parallel -> shardable across v7x's
            # two TensorCores; multi-step grid gives DMA/compute overlap.
            dimension_semantics=("parallel",),
            # ~1 MiB tiles * 4 streams * 2 buffers + f32 temps < ~12 MiB; raise
            # the scoped limit anyway (v5e default is only 16 MiB) so buffering
            # is never silently shrunk.  32 MiB is safe on v5e/v6e/v7x.
            vmem_limit_bytes=32 * 1024 * 1024,
        ),
    )(r1f, r2f, w_tiled, b_smem)

    return o1f.reshape(B, D), o2f.reshape(B, D)


def hierarchical_attention_ref(rep1, rep2, weight, bias):
    """Pure-JAX reference mirroring the PyTorch forward (exact f32 math)."""
    w = jnp.asarray(weight, jnp.float32).reshape(1, -1)
    b = jnp.asarray(bias, jnp.float32).reshape(1, 1)
    s1 = jnp.tanh(jnp.sum(rep1 * w, axis=-1, keepdims=True) + b)
    s2 = jnp.tanh(jnp.sum(rep2 * w, axis=-1, keepdims=True) + b)
    a = jax.nn.softmax(jnp.concatenate([s1, s2], axis=-1), axis=-1)
    return a[:, 0:1] * rep1, a[:, 1:2] * rep2


if __name__ == "__main__":
    key = jax.random.PRNGKey(0)
    k1, k2, kw = jax.random.split(key, 3)

    # Case 1: D < 128 -> lane-dense fold (fold=4, L=128), explicit 8-row tiles,
    # multi-step grid (2 steps) exercising the pipelined path.
    B, D = 64, 32
    rep1 = jax.random.normal(k1, (B, D), dtype=jnp.float32)
    rep2 = jax.random.normal(k2, (B, D), dtype=jnp.float32)
    weight = jax.random.uniform(kw, (1, D), dtype=jnp.float32, minval=-0.1, maxval=0.1)
    bias = jnp.zeros((1, 1), dtype=jnp.float32)

    out1, out2 = hierarchical_attention(rep1, rep2, weight, bias, block_rows=8)
    jax.block_until_ready((out1, out2))
    ref1, ref2 = hierarchical_attention_ref(rep1, rep2, weight, bias)
    assert jnp.allclose(out1, ref1, atol=1e-5, rtol=1e-5), "case1 out1 mismatch"
    assert jnp.allclose(out2, ref2, atol=1e-5, rtol=1e-5), "case1 out2 mismatch"

    # Case 2: D >= 128 -> unfolded path, auto-picked block_rows.
    B2, D2 = 16, 256
    r1b = jax.random.normal(k1, (B2, D2), dtype=jnp.float32)
    r2b = jax.random.normal(k2, (B2, D2), dtype=jnp.float32)
    w2 = jax.random.uniform(kw, (1, D2), dtype=jnp.float32, minval=-0.1, maxval=0.1)
    o1b, o2b = hierarchical_attention(r1b, r2b, w2, bias)
    jax.block_until_ready((o1b, o2b))
    rr1, rr2 = hierarchical_attention_ref(r1b, r2b, w2, bias)
    assert jnp.allclose(o1b, rr1, atol=1e-5, rtol=1e-5), "case2 out1 mismatch"
    assert jnp.allclose(o2b, rr2, atol=1e-5, rtol=1e-5), "case2 out2 mismatch"

    print("KERNEL_OK")
</pallas_src>

<mosaic_0001>
module attributes {stable_mosaic.version = 11 : i64} {
  func.func @kernel(%arg0: i32, %arg1: memref<8x128xf32, #tpu.memory_space<vmem>>, %arg2: memref<8x128xf32, #tpu.memory_space<vmem>>, %arg3: memref<1x128xf32, #tpu.memory_space<vmem>>, %arg4: memref<1x1xf32, #tpu.memory_space<smem>>, %arg5: memref<8x128xf32, #tpu.memory_space<vmem>>, %arg6: memref<8x128xf32, #tpu.memory_space<vmem>>) attributes {dimension_semantics = [#tpu.dimension_semantics<parallel>], iteration_bounds = array<i64: 2>, scalar_prefetch = 0 : i64, scratch_operands = 0 : i64, tpu.core_type = #tpu.core_type<tc>, window_params = [{transform_indices = @transform_0, window_bounds = array<i64: 8, 128>}, {transform_indices = @transform_1, window_bounds = array<i64: 8, 128>}, {pipeline_mode = #tpu.pipeline_mode<synchronous>, transform_indices = @transform_2, window_bounds = array<i64: 1, 128>}, {transform_indices = @transform_3, window_bounds = array<i64: 1, 1>}, {transform_indices = @transform_4, window_bounds = array<i64: 8, 128>}, {transform_indices = @transform_5, window_bounds = array<i64: 8, 128>}]} {
    %c0 = arith.constant 0 : index
    %c0_0 = arith.constant 0 : index
    %0 = vector.load %arg1[%c0, %c0_0] : memref<8x128xf32, #tpu.memory_space<vmem>>, vector<8x128xf32>
    %c0_1 = arith.constant 0 : index
    %c0_2 = arith.constant 0 : index
    %1 = vector.load %arg2[%c0_1, %c0_2] : memref<8x128xf32, #tpu.memory_space<vmem>>, vector<8x128xf32>
    %c0_3 = arith.constant 0 : index
    %c0_4 = arith.constant 0 : index
    %2 = vector.load %arg3[%c0_3, %c0_4] : memref<1x128xf32, #tpu.memory_space<vmem>>, vector<1x128xf32>
    %c0_5 = arith.constant 0 : index
    %c0_6 = arith.constant 0 : index
    %3 = memref.load %arg4[%c0_5, %c0_6] : memref<1x1xf32, #tpu.memory_space<smem>>
    %4 = vector.broadcast %2 : vector<1x128xf32> to vector<8x128xf32>
    %5 = arith.mulf %0, %4 : vector<8x128xf32>
    %6 = vector.broadcast %2 : vector<1x128xf32> to vector<8x128xf32>
    %7 = arith.mulf %1, %6 : vector<8x128xf32>
    %8 = tpu.iota {dimensions = array<i32: 1>} : vector<8x128xi32>
    %cst = arith.constant 0.000000e+00 : f32
    %9 = vector.broadcast %cst : f32 to vector<8x128xf32>
    %cst_7 = arith.constant 0.000000e+00 : f32
    %10 = vector.broadcast %cst_7 : f32 to vector<8x128xf32>
    %c0_i32 = arith.constant 0 : i32
    %11 = vector.broadcast %c0_i32 : i32 to vector<8x128xi32>
    %12 = arith.cmpi sge, %8, %11 : vector<8x128xi32>
    %c32_i32 = arith.constant 32 : i32
    %13 = vector.broadcast %c32_i32 : i32 to vector<8x128xi32>
    %14 = arith.cmpi slt, %8, %13 : vector<8x128xi32>
    %15 = arith.andi %12, %14 : vector<8x128xi1>
    %cst_8 = arith.constant 0.000000e+00 : f32
    %16 = vector.broadcast %cst_8 : f32 to vector<8x128xf32>
    %17 = arith.select %15, %5, %16 : vector<8x128xi1>, vector<8x128xf32>
    %cst_9 = arith.constant dense<0.000000e+00> : vector<8xf32>
    %18 = vector.multi_reduction <add>, %17, %cst_9 [1] : vector<8x128xf32> to vector<8xf32>
    %19 = vector.shape_cast %18 : vector<8xf32> to vector<8x1xf32>
    %20 = vector.broadcast %3 : f32 to vector<8x1xf32>
    %21 = arith.addf %19, %20 : vector<8x1xf32>
    %22 = math.tanh %21 : vector<8x1xf32>
    %cst_10 = arith.constant 0.000000e+00 : f32
    %23 = vector.broadcast %cst_10 : f32 to vector<8x128xf32>
    %24 = arith.select %15, %7, %23 : vector<8x128xi1>, vector<8x128xf32>
    %cst_11 = arith.constant dense<0.000000e+00> : vector<8xf32>
    %25 = vector.multi_reduction <add>, %24, %cst_11 [1] : vector<8x128xf32> to vector<8xf32>
    %26 = vector.shape_cast %25 : vector<8xf32> to vector<8x1xf32>
    %27 = vector.broadcast %3 : f32 to vector<8x1xf32>
    %28 = arith.addf %26, %27 : vector<8x1xf32>
    %29 = math.tanh %28 : vector<8x1xf32>
    %30 = arith.subf %29, %22 : vector<8x1xf32>
    %31 = math.exp %30 : vector<8x1xf32>
    %cst_12 = arith.constant 1.000000e+00 : f32
    %32 = vector.broadcast %cst_12 : f32 to vector<8x1xf32>
    %33 = arith.addf %32, %31 : vector<8x1xf32>
    %34 = tpu.reciprocal %33 : vector<8x1xf32> -> vector<8x1xf32>
    %35 = vector.shape_cast %34 : vector<8x1xf32> to vector<8x1xf32>
    %36 = vector.broadcast %35 : vector<8x1xf32> to vector<8x128xf32>
    %37 = arith.select %15, %36, %9 : vector<8x128xi1>, vector<8x128xf32>
    %38 = arith.mulf %31, %34 : vector<8x1xf32>
    %39 = vector.shape_cast %38 : vector<8x1xf32> to vector<8x1xf32>
    %40 = vector.broadcast %39 : vector<8x1xf32> to vector<8x128xf32>
    %41 = arith.select %15, %40, %10 : vector<8x128xi1>, vector<8x128xf32>
    %c32_i32_13 = arith.constant 32 : i32
    %42 = vector.broadcast %c32_i32_13 : i32 to vector<8x128xi32>
    %43 = arith.cmpi sge, %8, %42 : vector<8x128xi32>
    %c64_i32 = arith.constant 64 : i32
    %44 = vector.broadcast %c64_i32 : i32 to vector<8x128xi32>
    %45 = arith.cmpi slt, %8, %44 : vector<8x128xi32>
    %46 = arith.andi %43, %45 : vector<8x128xi1>
    %cst_14 = arith.constant 0.000000e+00 : f32
    %47 = vector.broadcast %cst_14 : f32 to vector<8x128xf32>
    %48 = arith.select %46, %5, %47 : vector<8x128xi1>, vector<8x128xf32>
    %cst_15 = arith.constant dense<0.000000e+00> : vector<8xf32>
    %49 = vector.multi_reduction <add>, %48, %cst_15 [1] : vector<8x128xf32> to vector<8xf32>
    %50 = vector.shape_cast %49 : vector<8xf32> to vector<8x1xf32>
    %51 = vector.broadcast %3 : f32 to vector<8x1xf32>
    %52 = arith.addf %50, %51 : vector<8x1xf32>
    %53 = math.tanh %52 : vector<8x1xf32>
    %cst_16 = arith.constant 0.000000e+00 : f32
    %54 = vector.broadcast %cst_16 : f32 to vector<8x128xf32>
    %55 = arith.select %46, %7, %54 : vector<8x128xi1>, vector<8x128xf32>
    %cst_17 = arith.constant dense<0.000000e+00> : vector<8xf32>
    %56 = vector.multi_reduction <add>, %55, %cst_17 [1] : vector<8x128xf32> to vector<8xf32>
    %57 = vector.shape_cast %56 : vector<8xf32> to vector<8x1xf32>
    %58 = vector.broadcast %3 : f32 to vector<8x1xf32>
    %59 = arith.addf %57, %58 : vector<8x1xf32>
    %60 = math.tanh %59 : vector<8x1xf32>
    %61 = arith.subf %60, %53 : vector<8x1xf32>
    %62 = math.exp %61 : vector<8x1xf32>
    %cst_18 = arith.constant 1.000000e+00 : f32
    %63 = vector.broadcast %cst_18 : f32 to vector<8x1xf32>
    %64 = arith.addf %63, %62 : vector<8x1xf32>
    %65 = tpu.reciprocal %64 : vector<8x1xf32> -> vector<8x1xf32>
    %66 = vector.shape_cast %65 : vector<8x1xf32> to vector<8x1xf32>
    %67 = vector.broadcast %66 : vector<8x1xf32> to vector<8x128xf32>
    %68 = arith.select %46, %67, %37 : vector<8x128xi1>, vector<8x128xf32>
    %69 = arith.mulf %62, %65 : vector<8x1xf32>
    %70 = vector.shape_cast %69 : vector<8x1xf32> to vector<8x1xf32>
    %71 = vector.broadcast %70 : vector<8x1xf32> to vector<8x128xf32>
    %72 = arith.select %46, %71, %41 : vector<8x128xi1>, vector<8x128xf32>
    %c64_i32_19 = arith.constant 64 : i32
    %73 = vector.broadcast %c64_i32_19 : i32 to vector<8x128xi32>
    %74 = arith.cmpi sge, %8, %73 : vector<8x128xi32>
    %c96_i32 = arith.constant 96 : i32
    %75 = vector.broadcast %c96_i32 : i32 to vector<8x128xi32>
    %76 = arith.cmpi slt, %8, %75 : vector<8x128xi32>
    %77 = arith.andi %74, %76 : vector<8x128xi1>
    %cst_20 = arith.constant 0.000000e+00 : f32
    %78 = vector.broadcast %cst_20 : f32 to vector<8x128xf32>
    %79 = arith.select %77, %5, %78 : vector<8x128xi1>, vector<8x128xf32>
    %cst_21 = arith.constant dense<0.000000e+00> : vector<8xf32>
    %80 = vector.multi_reduction <add>, %79, %cst_21 [1] : vector<8x128xf32> to vector<8xf32>
    %81 = vector.shape_cast %80 : vector<8xf32> to vector<8x1xf32>
    %82 = vector.broadcast %3 : f32 to vector<8x1xf32>
    %83 = arith.addf %81, %82 : vector<8x1xf32>
    %84 = math.tanh %83 : vector<8x1xf32>
    %cst_22 = arith.constant 0.000000e+00 : f32
    %85 = vector.broadcast %cst_22 : f32 to vector<8x128xf32>
    %86 = arith.select %77, %7, %85 : vector<8x128xi1>, vector<8x128xf32>
    %cst_23 = arith.constant dense<0.000000e+00> : vector<8xf32>
    %87 = vector.multi_reduction <add>, %86, %cst_23 [1] : vector<8x128xf32> to vector<8xf32>
    %88 = vector.shape_cast %87 : vector<8xf32> to vector<8x1xf32>
    %89 = vector.broadcast %3 : f32 to vector<8x1xf32>
    %90 = arith.addf %88, %89 : vector<8x1xf32>
    %91 = math.tanh %90 : vector<8x1xf32>
    %92 = arith.subf %91, %84 : vector<8x1xf32>
    %93 = math.exp %92 : vector<8x1xf32>
    %cst_24 = arith.constant 1.000000e+00 : f32
    %94 = vector.broadcast %cst_24 : f32 to vector<8x1xf32>
    %95 = arith.addf %94, %93 : vector<8x1xf32>
    %96 = tpu.reciprocal %95 : vector<8x1xf32> -> vector<8x1xf32>
    %97 = vector.shape_cast %96 : vector<8x1xf32> to vector<8x1xf32>
    %98 = vector.broadcast %97 : vector<8x1xf32> to vector<8x128xf32>
    %99 = arith.select %77, %98, %68 : vector<8x128xi1>, vector<8x128xf32>
    %100 = arith.mulf %93, %96 : vector<8x1xf32>
    %101 = vector.shape_cast %100 : vector<8x1xf32> to vector<8x1xf32>
    %102 = vector.broadcast %101 : vector<8x1xf32> to vector<8x128xf32>
    %103 = arith.select %77, %102, %72 : vector<8x128xi1>, vector<8x128xf32>
    %c96_i32_25 = arith.constant 96 : i32
    %104 = vector.broadcast %c96_i32_25 : i32 to vector<8x128xi32>
    %105 = arith.cmpi sge, %8, %104 : vector<8x128xi32>
    %c128_i32 = arith.constant 128 : i32
    %106 = vector.broadcast %c128_i32 : i32 to vector<8x128xi32>
    %107 = arith.cmpi slt, %8, %106 : vector<8x128xi32>
    %108 = arith.andi %105, %107 : vector<8x128xi1>
    %cst_26 = arith.constant 0.000000e+00 : f32
    %109 = vector.broadcast %cst_26 : f32 to vector<8x128xf32>
    %110 = arith.select %108, %5, %109 : vector<8x128xi1>, vector<8x128xf32>
    %cst_27 = arith.constant dense<0.000000e+00> : vector<8xf32>
    %111 = vector.multi_reduction <add>, %110, %cst_27 [1] : vector<8x128xf32> to vector<8xf32>
    %112 = vector.shape_cast %111 : vector<8xf32> to vector<8x1xf32>
    %113 = vector.broadcast %3 : f32 to vector<8x1xf32>
    %114 = arith.addf %112, %113 : vector<8x1xf32>
    %115 = math.tanh %114 : vector<8x1xf32>
    %cst_28 = arith.constant 0.000000e+00 : f32
    %116 = vector.broadcast %cst_28 : f32 to vector<8x128xf32>
    %117 = arith.select %108, %7, %116 : vector<8x128xi1>, vector<8x128xf32>
    %cst_29 = arith.constant dense<0.000000e+00> : vector<8xf32>
    %118 = vector.multi_reduction <add>, %117, %cst_29 [1] : vector<8x128xf32> to vector<8xf32>
    %119 = vector.shape_cast %118 : vector<8xf32> to vector<8x1xf32>
    %120 = vector.broadcast %3 : f32 to vector<8x1xf32>
    %121 = arith.addf %119, %120 : vector<8x1xf32>
    %122 = math.tanh %121 : vector<8x1xf32>
    %123 = arith.subf %122, %115 : vector<8x1xf32>
    %124 = math.exp %123 : vector<8x1xf32>
    %cst_30 = arith.constant 1.000000e+00 : f32
    %125 = vector.broadcast %cst_30 : f32 to vector<8x1xf32>
    %126 = arith.addf %125, %124 : vector<8x1xf32>
    %127 = tpu.reciprocal %126 : vector<8x1xf32> -> vector<8x1xf32>
    %128 = vector.shape_cast %127 : vector<8x1xf32> to vector<8x1xf32>
    %129 = vector.broadcast %128 : vector<8x1xf32> to vector<8x128xf32>
    %130 = arith.select %108, %129, %99 : vector<8x128xi1>, vector<8x128xf32>
    %131 = arith.mulf %124, %127 : vector<8x1xf32>
    %132 = vector.shape_cast %131 : vector<8x1xf32> to vector<8x1xf32>
    %133 = vector.broadcast %132 : vector<8x1xf32> to vector<8x128xf32>
    %134 = arith.select %108, %133, %103 : vector<8x128xi1>, vector<8x128xf32>
    %135 = arith.mulf %130, %0 : vector<8x128xf32>
    %c0_31 = arith.constant 0 : index
    %c0_32 = arith.constant 0 : index
    %136 = vector.load %arg5[%c0_31, %c0_32] : memref<8x128xf32, #tpu.memory_space<vmem>>, vector<8x128xf32>
    tpu.vector_store %arg5[%c0_31, %c0_32], %135 {strides = array<i32>} : memref<8x128xf32, #tpu.memory_space<vmem>>, vector<8x128xf32>,
    %137 = arith.mulf %134, %1 : vector<8x128xf32>
    %c0_33 = arith.constant 0 : index
    %c0_34 = arith.constant 0 : index
    %138 = vector.load %arg6[%c0_33, %c0_34] : memref<8x128xf32, #tpu.memory_space<vmem>>, vector<8x128xf32>
    tpu.vector_store %arg6[%c0_33, %c0_34], %137 {strides = array<i32>} : memref<8x128xf32, #tpu.memory_space<vmem>>, vector<8x128xf32>,
    return
  }
  func.func @transform_0(%arg0: i32) -> (i32, i32) {
    %c0_i32 = arith.constant 0 : i32
    %c0_i32_0 = arith.constant 0 : i32
    return %arg0, %c0_i32 : i32, i32
  }
  func.func @transform_1(%arg0: i32) -> (i32, i32) {
    %c0_i32 = arith.constant 0 : i32
    %c0_i32_0 = arith.constant 0 : i32
    return %arg0, %c0_i32 : i32, i32
  }
  func.func @transform_2(%arg0: i32) -> (i32, i32) {
    %c0_i32 = arith.constant 0 : i32
    %c0_i32_0 = arith.constant 0 : i32
    %c0_i32_1 = arith.constant 0 : i32
    return %c0_i32, %c0_i32_0 : i32, i32
  }
  func.func @transform_3(%arg0: i32) -> (i32, i32) {
    %c0_i32 = arith.constant 0 : i32
    %c0_i32_0 = arith.constant 0 : i32
    %c0_i32_1 = arith.constant 0 : i32
    return %c0_i32, %c0_i32_0 : i32, i32
  }
  func.func @transform_4(%arg0: i32) -> (i32, i32) {
    %c0_i32 = arith.constant 0 : i32
    %c0_i32_0 = arith.constant 0 : i32
    return %arg0, %c0_i32 : i32, i32
  }
  func.func @transform_5(%arg0: i32) -> (i32, i32) {
    %c0_i32 = arith.constant 0 : i32
    %c0_i32_0 = arith.constant 0 : i32
    return %arg0, %c0_i32 : i32, i32
  }
}

</mosaic_0001>

<llo_original>
// kernel: tpu_custom_call.1
$region0: #{tpu_custom_call.1}
  #allocation0 [shape = 'u32[]', space=smem, size = 0x4, offset = 0x4, fixed_abs, tag = 'smem constant byte address 0x4 - core index']
  #allocation1 [shape = 'u32[144,128]{1,0:T(1,128)}', space=vmem, size = 0x12000, scoped, tag = 'internal scratch']
  #allocation2 [shape = 'f32[1,1]{1,0:T(1,128)S(6)}', space=smem, size = 0x200, scoped, tag = 'scoped memory for tpu_custom_call.1']
  %s0 = inlined_call_operand.hbm [shape: f32[16,128], index: 0, kind: input, shape index: {}]
  %s1 = inlined_call_operand.hbm [shape: f32[16,128], index: 1, kind: input, shape index: {}]
  %s2 = inlined_call_operand.vmem [shape: f32[1,128], index: 2, kind: input, shape index: {}]
  %s3 = inlined_call_operand.<no memory space> [shape: f32[1,1], index: 3, kind: input, shape index: {}]
  %s4 = inlined_call_operand.hbm [shape: f32[16,128], index: 4, kind: output, shape index: {0}]
  %s5 = inlined_call_operand.hbm [shape: f32[16,128], index: 5, kind: output, shape index: {1}]
  %6 = xla_tuple %s4, %s5
  %s7 = sld [smem:[#allocation0]]
  $region65: #{tpu_custom_call.1} parent=0
    _
  %s9 = ssub.s32 1, %s7
  %s10 = scalar_select 0, %s9, %s7
  %11 = sst [smem:[#allocation2]] %s3
  $region1: #{tpu_custom_call.1} parent=0
    #allocation3 [shape = 'u8[8192]{0}', space=vmem, size = 0x2000, scoped, tag = 'input window, operand 0']
    #allocation4 [shape = 's32[2]{0}', space=sflag, size = 0x8, scoped, tag = 'scoped memory for tpu_custom_call.1']
    #allocation5 [shape = 's32[2]{0}', space=sflag, size = 0x8, scoped, tag = 'scoped memory for tpu_custom_call.1']
    #allocation6 [shape = 'u8[8192]{0}', space=vmem, size = 0x2000, scoped, tag = 'input window, operand 1']
    #allocation7 [shape = 's32[2]{0}', space=sflag, size = 0x8, scoped, tag = 'scoped memory for tpu_custom_call.1']
    #allocation8 [shape = 'u8[8192]{0}', space=vmem, size = 0x2000, scoped, tag = 'output window, operand 0']
    #allocation9 [shape = 'u8[8192]{0}', space=vmem, size = 0x2000, scoped, tag = 'output window, operand 1']
    #allocation10 [shape = 's32[2]{0}', space=sflag, size = 0x8, scoped, tag = 'scoped memory for tpu_custom_call.1']
    %12 = vsyncpa [#allocation4], 0
    %s13 = scalar_lea.sflag [#allocation4], 1
    %14 = vsyncpa %s13, 0
    %15 = vsyncpa [#allocation7], 0
    %s16 = scalar_lea.sflag [#allocation7], 1
    %17 = vsyncpa %s16, 0
    %18 = vsyncpa [#allocation5], 0
    %s19 = scalar_lea.sflag [#allocation5], 1
    %20 = vsyncpa %s19, 0
    %21 = vsyncpa [#allocation10], 0
    %s22 = scalar_lea.sflag [#allocation10], 1
    %23 = vsyncpa %s22, 0
    loop: start=0, step=1, limit=4
    $region2: #{tpu_custom_call.1} parent=1 // loop_pre_header
      _
    $region3: #{tpu_custom_call.1} parent=1 // loop_header
      %s25 = sphi 0, %s29
      %p26 = scmp.ge.s32.totalorder %s25, 4
      %s35 = sphi 0, %s37
      %s38 = sphi 0, %s35
      %s39 = sphi 0, %s38
      %s55 = sphi 0, %s39
      %s61 = sphi 0, %s63
      %s64 = sphi 0, %s61
      %s65 = sphi 0, %s64
      %s81 = sphi 0, %s65
      %s85 = sphi 0, %s85
      %s87 = sphi 0, %s85
      %s88 = sphi 0, %s87
      %s102 = sphi 0, %s88
      %s106 = sphi 0, %s106
      %s108 = sphi 0, %s106
      %s109 = sphi 0, %s108
      %s123 = sphi 0, %s109
      %s129 = sphi 0, %s131
      %s132 = sphi 0, %s129
      %s133 = sphi 0, %s132
      %s149 = sphi 0, %s133
      %s155 = sphi 0, %s157
      %s158 = sphi 0, %s155
      %s159 = sphi 0, %s158
      %s175 = sphi 0, %s159
    $region4: #{tpu_custom_call.1} parent=1 // loop_header_branch
      %28 = sbr.rel (%p26) target = $region8
    $region5: #{tpu_custom_call.1} parent=1 // loop_body
      %s30 = ssub.s32 %s25, 1
      %s31 = ssub.s32 %s25, 2
      %s32 = sadd.s32 %s25, 1
      %s33 = ssub.s32 %s25, %s32
      %p34 = scmp.eq.s32.totalorder %s33, 0
      %s36 = sadd.s32 %s35, 1
      %s37 = scalar_select %p34, %s35, %s36
      %p40 = pneg %p34
      %p41 = scmp.eq.s32.totalorder %s25, 1
      %p42 = por %p40, %p41
      %p43 = scmp.ne.s32.totalorder %s35, %s38
      %p44 = scmp.eq.s32.totalorder %s25, 0
      %p45 = por %p43, %p44
      %p46 = scmp.ne.s32.totalorder %s35, %s38
      %p47 = scmp.eq.s32.totalorder %s30, 1
      %p48 = por %p46, %p47
      %p49 = scmp.ne.s32.totalorder %s38, %s39
      %p50 = scmp.eq.s32.totalorder %s30, 0
      %p51 = por %p49, %p50
      %p52 = scmp.ne.s32.totalorder %s38, %s39
      %p53 = scmp.eq.s32.totalorder %s31, 1
      %p54 = por %p52, %p53
      %p56 = scmp.ne.s32.totalorder %s39, %s55
      %p57 = scmp.eq.s32.totalorder %s31, 0
      %p58 = por %p56, %p57
      %s59 = ssub.s32 %s25, %s32
      %p60 = scmp.eq.s32.totalorder %s59, 0
      %s62 = sadd.s32 %s61, 1
      %s63 = scalar_select %p60, %s61, %s62
      %p66 = pneg %p60
      %p67 = scmp.eq.s32.totalorder %s25, 1
      %p68 = por %p66, %p67
      %p69 = scmp.ne.s32.totalorder %s61, %s64
      %p70 = scmp.eq.s32.totalorder %s25, 0
      %p71 = por %p69, %p70
      %p72 = scmp.ne.s32.totalorder %s61, %s64
      %p73 = scmp.eq.s32.totalorder %s30, 1
      %p74 = por %p72, %p73
      %p75 = scmp.ne.s32.totalorder %s64, %s65
      %p76 = scmp.eq.s32.totalorder %s30, 0
      %p77 = por %p75, %p76
      %p78 = scmp.ne.s32.totalorder %s64, %s65
      %p79 = scmp.eq.s32.totalorder %s31, 1
      %p80 = por %p78, %p79
      %p82 = scmp.ne.s32.totalorder %s65, %s81
      %p83 = scmp.eq.s32.totalorder %s31, 0
      %p84 = por %p82, %p83
      %s86 = sadd.s32 %s85, 1
      %p89 = scmp.eq.s32.totalorder %s25, 1
      %p90 = scmp.ne.s32.totalorder %s85, %s87
      %p91 = scmp.eq.s32.totalorder %s25, 0
      %p92 = por %p90, %p91
      %p93 = scmp.ne.s32.totalorder %s85, %s87
      %p94 = scmp.eq.s32.totalorder %s30, 1
      %p95 = por %p93, %p94
      %p96 = scmp.ne.s32.totalorder %s87, %s88
      %p97 = scmp.eq.s32.totalorder %s30, 0
      %p98 = por %p96, %p97
      %p99 = scmp.ne.s32.totalorder %s87, %s88
      %p100 = scmp.eq.s32.totalorder %s31, 1
      %p101 = por %p99, %p100
      %p103 = scmp.ne.s32.totalorder %s88, %s102
      %p104 = scmp.eq.s32.totalorder %s31, 0
      %p105 = por %p103, %p104
      %s107 = sadd.s32 %s106, 1
      %p110 = scmp.eq.s32.totalorder %s25, 1
      %p111 = scmp.ne.s32.totalorder %s106, %s108
      %p112 = scmp.eq.s32.totalorder %s25, 0
      %p113 = por %p111, %p112
      %p114 = scmp.ne.s32.totalorder %s106, %s108
      %p115 = scmp.eq.s32.totalorder %s30, 1
      %p116 = por %p114, %p115
      %p117 = scmp.ne.s32.totalorder %s108, %s109
      %p118 = scmp.eq.s32.totalorder %s30, 0
      %p119 = por %p117, %p118
      %p120 = scmp.ne.s32.totalorder %s108, %s109
      %p121 = scmp.eq.s32.totalorder %s31, 1
      %p122 = por %p120, %p121
      %p124 = scmp.ne.s32.totalorder %s109, %s123
      %p125 = scmp.eq.s32.totalorder %s31, 0
      %p126 = por %p124, %p125
      %s127 = ssub.s32 %s25, %s32
      %p128 = scmp.eq.s32.totalorder %s127, 0
      %s130 = sadd.s32 %s129, 1
      %s131 = scalar_select %p128, %s129, %s130
      %p134 = pneg %p128
      %p135 = scmp.eq.s32.totalorder %s25, 1
      %p136 = por %p134, %p135
      %p137 = scmp.ne.s32.totalorder %s129, %s132
      %p138 = scmp.eq.s32.totalorder %s25, 0
      %p139 = por %p137, %p138
      %p140 = scmp.ne.s32.totalorder %s129, %s132
      %p141 = scmp.eq.s32.totalorder %s30, 1
      %p142 = por %p140, %p141
      %p143 = scmp.ne.s32.totalorder %s132, %s133
      %p144 = scmp.eq.s32.totalorder %s30, 0
      %p145 = por %p143, %p144
      %p146 = scmp.ne.s32.totalorder %s132, %s133
      %p147 = scmp.eq.s32.totalorder %s31, 1
      %p148 = por %p146, %p147
      %p150 = scmp.ne.s32.totalorder %s133, %s149
      %p151 = scmp.eq.s32.totalorder %s31, 0
      %p152 = por %p150, %p151
      %s153 = ssub.s32 %s25, %s32
      %p154 = scmp.eq.s32.totalorder %s153, 0
      %s156 = sadd.s32 %s155, 1
      %s157 = scalar_select %p154, %s155, %s156
      %p160 = pneg %p154
      %p161 = scmp.eq.s32.totalorder %s25, 1
      %p162 = por %p160, %p161
      %p163 = scmp.ne.s32.totalorder %s155, %s158
      %p164 = scmp.eq.s32.totalorder %s25, 0
      %p165 = por %p163, %p164
      %p166 = scmp.ne.s32.totalorder %s155, %s158
      %p167 = scmp.eq.s32.totalorder %s30, 1
      %p168 = por %p166, %p167
      %p169 = scmp.ne.s32.totalorder %s158, %s159
      %p170 = scmp.eq.s32.totalorder %s30, 0
      %p171 = por %p169, %p170
      %p172 = scmp.ne.s32.totalorder %s158, %s159
      %p173 = scmp.eq.s32.totalorder %s31, 1
      %p174 = por %p172, %p173
      %p176 = scmp.ne.s32.totalorder %s159, %s175
      %p177 = scmp.eq.s32.totalorder %s31, 0
      %p178 = por %p176, %p177
      %p179 = scmp.le.s32.totalorder 1, %s25
      %p180 = scmp.lt.s32.totalorder %s25, 3
      %p181 = pnand %p179, %p180
      %p182 = pneg %p181
      // Predicated region
      $region9: #{tpu_custom_call.1} parent=5 // pred_check
        _
      $region10: #{tpu_custom_call.1} parent=5 // pred_check_branch
        %184 = sbr.rel (%p181) target = $region12
      $region11: #{tpu_custom_call.1} parent=5 // pred_region
        %s185 = ssub.s32 %s25, 1
        // Predicated region
        $region13: #{tpu_custom_call.1} parent=11 // pred_check
          %p186 = pneg %p98
        $region14: #{tpu_custom_call.1} parent=11 // pred_check_branch
          %188 = sbr.rel (%p186) target = $region16
        $region15: #{tpu_custom_call.1} parent=11 // pred_region
          _
        $region16: #{tpu_custom_call.1} parent=11 // pred_fallthru
          _
        // Predicated region
        $region17: #{tpu_custom_call.1} parent=11 // pred_check
          %p189 = pneg %p119
        $region18: #{tpu_custom_call.1} parent=11 // pred_check_branch
          %191 = sbr.rel (%p189) target = $region20
        $region19: #{tpu_custom_call.1} parent=11 // pred_region
          _
        $region20: #{tpu_custom_call.1} parent=11 // pred_fallthru
          _
      $region12: #{tpu_custom_call.1} parent=5 // pred_fallthru
        _
      %p192 = scmp.lt.s32.totalorder %s25, 2
      // Predicated region
      $region21: #{tpu_custom_call.1} parent=5 // pred_check
        %p193 = pneg %p192
      $region22: #{tpu_custom_call.1} parent=5 // pred_check_branch
        %195 = sbr.rel (%p193) target = $region24
      $region23: #{tpu_custom_call.1} parent=5 // pred_region
        // Predicated region
        $region25: #{tpu_custom_call.1} parent=23 // pred_check
          %p196 = pneg %p45
        $region26: #{tpu_custom_call.1} parent=23 // pred_check_branch
          %198 = sbr.rel (%p196) target = $region28
        $region27: #{tpu_custom_call.1} parent=23 // pred_region
          %s199 = sand.u32 %s35, 1
          %s200 = scalar_lea.sflag [#allocation4], %s199
          %s201 = sand.u32 %s35, 1
          %s202 = smul.addr %s201, 8
          %s203 = scalar_lea.vmem [#allocation3], %s202
          %s205 = ssub.s32 128, 128
          %206 = vsyncadd %s200, %s205
          %s207 = smul.addr %s25, 128
          %s208 = scalar_lea.hbm %s0, %s207
          %s210 = sshll.u32 %s203, 4
          %s211 = int_to_ptr.vmem [resolvable:$true] %s210
          %213 = dma.hbm_to_vmem [thread:$0]  %s208, 128, %s211, %s200
        $region28: #{tpu_custom_call.1} parent=23 // pred_fallthru
          _
        // Predicated region
        $region29: #{tpu_custom_call.1} parent=23 // pred_check
          %p214 = pneg %p71
        $region30: #{tpu_custom_call.1} parent=23 // pred_check_branch
          %216 = sbr.rel (%p214) target = $region32
        $region31: #{tpu_custom_call.1} parent=23 // pred_region
          %s217 = sand.u32 %s61, 1
          %s218 = scalar_lea.sflag [#allocation7], %s217
          %s219 = sand.u32 %s61, 1
          %s220 = smul.addr %s219, 8
          %s221 = scalar_lea.vmem [#allocation6], %s220
          %s223 = ssub.s32 128, 128
          %224 = vsyncadd %s218, %s223
          %s225 = smul.addr %s25, 128
          %s226 = scalar_lea.hbm %s1, %s225
          %s228 = sshll.u32 %s221, 4
          %s229 = int_to_ptr.vmem [resolvable:$true] %s228
          %231 = dma.hbm_to_vmem [thread:$0]  %s226, 128, %s229, %s218
        $region32: #{tpu_custom_call.1} parent=23 // pred_fallthru
          _
      $region24: #{tpu_custom_call.1} parent=5 // pred_fallthru
        _
      %p232 = scmp.le.s32.totalorder 1, %s25
      %p233 = scmp.lt.s32.totalorder %s25, 3
      %p234 = pnand %p232, %p233
      %p235 = pneg %p234
      // Predicated region
      $region33: #{tpu_custom_call.1} parent=5 // pred_check
        _
      $region34: #{tpu_custom_call.1} parent=5 // pred_check_branch
        %237 = sbr.rel (%p234) target = $region36
      $region35: #{tpu_custom_call.1} parent=5 // pred_region
        %s238 = ssub.s32 %s25, 1
        %s239 = sand.u32 %s38, 1
        %s240 = scalar_lea.sflag [#allocation4], %s239
        %s241 = sand.u32 %s38, 1
        %s242 = smul.addr %s241, 8
        %s243 = scalar_lea.vmem [#allocation3], %s242
        // Predicated region
        $region37: #{tpu_custom_call.1} parent=35 // pred_check
          %p244 = pneg %p51
        $region38: #{tpu_custom_call.1} parent=35 // pred_check_branch
          %246 = sbr.rel (%p244) target = $region40
        $region39: #{tpu_custom_call.1} parent=35 // pred_region
          %247 = dma.done %s240, 128
        $region40: #{tpu_custom_call.1} parent=35 // pred_fallthru
          _
        %s248 = sand.u32 %s64, 1
        %s249 = scalar_lea.sflag [#allocation7], %s248
        %s250 = sand.u32 %s64, 1
        %s251 = smul.addr %s250, 8
        %s252 = scalar_lea.vmem [#allocation6], %s251
        // Predicated region
        $region41: #{tpu_custom_call.1} parent=35 // pred_check
          %p253 = pneg %p77
        $region42: #{tpu_custom_call.1} parent=35 // pred_check_branch
          %255 = sbr.rel (%p253) target = $region44
        $region43: #{tpu_custom_call.1} parent=35 // pred_region
          %256 = dma.done %s249, 128
        $region44: #{tpu_custom_call.1} parent=35 // pred_fallthru
          _
        %s257 = sand.u32 %s38, 1
        %s258 = scalar_lea.sflag [#allocation4], %s257
        %s259 = sand.u32 %s38, 1
        %s260 = smul.addr %s259, 8
        %s261 = scalar_lea.vmem [#allocation3], %s260
        %p262 = pneg %p51
        %p263 = pneg %p48
        %s264 = sand.u32 %s64, 1
        %s265 = scalar_lea.sflag [#allocation7], %s264
        %s266 = sand.u32 %s64, 1
        %s267 = smul.addr %s266, 8
        %s268 = scalar_lea.vmem [#allocation6], %s267
        %p269 = pneg %p77
        %p270 = pneg %p74
        %p271 = pneg %p98
        %p272 = pneg %p95
        %p273 = pneg %p119
        %p274 = pneg %p116
        %p275 = pneg %p145
        %p276 = pneg %p142
        %s277 = sand.u32 %s132, 1
        %s278 = scalar_lea.sflag [#allocation5], %s277
        %s279 = sand.u32 %s132, 1
        %s280 = smul.addr %s279, 8
        %s281 = scalar_lea.vmem [#allocation8], %s280
        %p282 = pneg %p171
        %p283 = pneg %p168
        %s284 = sand.u32 %s158, 1
        %s285 = scalar_lea.sflag [#allocation10], %s284
        %s286 = sand.u32 %s158, 1
        %s287 = smul.addr %s286, 8
        %s288 = scalar_lea.vmem [#allocation9], %s287
        %v289 = vld [vmem:[%s243] sm:$0xff]
        %v290 = vld [vmem:[%s252] sm:$0xff]
        %v291 = vld [vmem:[%s2] sm:$0x1]
        %s292 = sld [smem:[#allocation2]]
        %v294 = vlaneseq
        %v295 = vshrl.u32 %v294, 7
        %v296 = vsub.s32 0, %v295
        %v297 = vrot.slane %v291, %v296
        %v299 = vmul.f32 %v289, %v297
        %v300 = vmul.f32 %v290, %v297
        %v301 = vlaneseq
        %v302 = vand.u32 %v301, 127
        %vm303 = vcmp.ge.s32.totalorder %v302, 0
        %vm304 = vcmp.lt.s32.totalorder %v302, 32
        %vm305 = vmand %vm303, %vm304
        %v306 = vsel %vm305, %v299, 0.0
        %307 = vadd.xlane.f32.xlu0 %v306
        %v308 = vpop.xlane.xlu0 %307
        %v309 = vstv %s292
        %v310 = vadd.f32 %v308, %v309
        %v311 = vtanh.pop %v310
        %v312 = vsel %vm305, %v300, 0.0
        %313 = vadd.xlane.f32.xlu0 %v312
        %v314 = vpop.xlane.xlu0 %313
        %v315 = vadd.f32 %v314, %v309
        %v316 = vtanh.pop %v315
        %v317 = vsub.f32 %v316, %v311
        %v318 = vmul.f32 %v317, 1.442695
        %v319 = vpow.pop %v318
        %v320 = vadd.f32 %v319, 1.0
        %v321 = vrcp.pop %v320
        %v322 = vsel %vm305, %v321, 0.0
        %v323 = vmul.f32 %v319, %v321
        %v324 = vsel %vm305, %v323, 0.0
        %vm325 = vcmp.ge.s32.totalorder %v302, 32
        %vm326 = vcmp.lt.s32.totalorder %v302, 64
        %vm327 = vmand %vm325, %vm326
        %v328 = vsel %vm327, %v299, 0.0
        %329 = vadd.xlane.f32.xlu0 %v328
        %v330 = vpop.xlane.xlu0 %329
        %v331 = vadd.f32 %v330, %v309
        %v332 = vtanh.pop %v331
        %v333 = vsel %vm327, %v300, 0.0
        %334 = vadd.xlane.f32.xlu0 %v333
        %v335 = vpop.xlane.xlu0 %334
        %v336 = vadd.f32 %v335, %v309
        %v337 = vtanh.pop %v336
        %v338 = vsub.f32 %v337, %v332
        %v339 = vmul.f32 %v338, 1.442695
        %v340 = vpow.pop %v339
        %v341 = vadd.f32 %v340, 1.0
        %v342 = vrcp.pop %v341
        %v343 = vsel %vm327, %v342, %v322
        %v344 = vmul.f32 %v340, %v342
        %v345 = vsel %vm327, %v344, %v324
        %vm346 = vcmp.ge.s32.totalorder %v302, 64
        %vm347 = vcmp.lt.s32.totalorder %v302, 96
        %vm348 = vmand %vm346, %vm347
        %v349 = vsel %vm348, %v299, 0.0
        %350 = vadd.xlane.f32.xlu0 %v349
        %v351 = vpop.xlane.xlu0 %350
        %v352 = vadd.f32 %v351, %v309
        %v353 = vtanh.pop %v352
        %v354 = vsel %vm348, %v300, 0.0
        %355 = vadd.xlane.f32.xlu0 %v354
        %v356 = vpop.xlane.xlu0 %355
        %v357 = vadd.f32 %v356, %v309
        %v358 = vtanh.pop %v357
        %v359 = vsub.f32 %v358, %v353
        %v360 = vmul.f32 %v359, 1.442695
        %v361 = vpow.pop %v360
        %v362 = vadd.f32 %v361, 1.0
        %v363 = vrcp.pop %v362
        %v364 = vsel %vm348, %v363, %v343
        %v365 = vmul.f32 %v361, %v363
        %v366 = vsel %vm348, %v365, %v345
        %vm367 = vcmp.ge.s32.totalorder %v302, 96
        %vm368 = vcmp.lt.s32.totalorder %v302, 128
        %vm369 = vmand %vm367, %vm368
        %v370 = vsel %vm369, %v299, 0.0
        %371 = vadd.xlane.f32.xlu0 %v370
        %v372 = vpop.xlane.xlu0 %371
        %v373 = vadd.f32 %v372, %v309
        %v374 = vtanh.pop %v373
        %v375 = vsel %vm369, %v300, 0.0
        %376 = vadd.xlane.f32.xlu0 %v375
        %v377 = vpop.xlane.xlu0 %376
        %v378 = vadd.f32 %v377, %v309
        %v379 = vtanh.pop %v378
        %v380 = vsub.f32 %v379, %v374
        %v381 = vmul.f32 %v380, 1.442695
        %v382 = vpow.pop %v381
        %v383 = vadd.f32 %v382, 1.0
        %v384 = vrcp.pop %v383
        %v385 = vsel %vm369, %v384, %v364
        %v386 = vmul.f32 %v382, %v384
        %v387 = vsel %vm369, %v386, %v366
        %v388 = vmul.f32 %v385, %v289
        %389 = vst [vmem:[%s281] sm:$0xff] %v388
        %v390 = vmul.f32 %v387, %v290
        %391 = vst [vmem:[%s288] sm:$0xff] %v390
        %s392 = sand.u32 %s132, 1
        %s393 = scalar_lea.sflag [#allocation5], %s392
        %s394 = sand.u32 %s132, 1
        %s395 = smul.addr %s394, 8
        %s396 = scalar_lea.vmem [#allocation8], %s395
        %s397 = sand.u32 %s158, 1
        %s398 = scalar_lea.sflag [#allocation10], %s397
        %s399 = sand.u32 %s158, 1
        %s400 = smul.addr %s399, 8
        %s401 = scalar_lea.vmem [#allocation9], %s400
        // Predicated region
        $region45: #{tpu_custom_call.1} parent=35 // pred_check
          %p402 = pneg %p142
        $region46: #{tpu_custom_call.1} parent=35 // pred_check_branch
          %404 = sbr.rel (%p402) target = $region48
        $region47: #{tpu_custom_call.1} parent=35 // pred_region
          %s406 = ssub.s32 128, 128
          %407 = vsyncadd %s393, %s406
          %s408 = smul.addr %s30, 128
          %s409 = scalar_lea.hbm %s4, %s408
          %s411 = sshll.u32 %s396, 4
          %s412 = int_to_ptr.vmem [resolvable:$true] %s411
          %414 = dma.vmem_to_hbm [thread:$0]  %s412, 128, %s409, %s393
        $region48: #{tpu_custom_call.1} parent=35 // pred_fallthru
          _
        // Predicated region
        $region49: #{tpu_custom_call.1} parent=35 // pred_check
          %p415 = pneg %p168
        $region50: #{tpu_custom_call.1} parent=35 // pred_check_branch
          %417 = sbr.rel (%p415) target = $region52
        $region51: #{tpu_custom_call.1} parent=35 // pred_region
          %s419 = ssub.s32 128, 128
          %420 = vsyncadd %s398, %s419
          %s421 = smul.addr %s30, 128
          %s422 = scalar_lea.hbm %s5, %s421
          %s424 = sshll.u32 %s401, 4
          %s425 = int_to_ptr.vmem [resolvable:$true] %s424
          %427 = dma.vmem_to_hbm [thread:$0]  %s425, 128, %s422, %s398
        $region52: #{tpu_custom_call.1} parent=35 // pred_fallthru
          _
      $region36: #{tpu_custom_call.1} parent=5 // pred_fallthru
        _
      %p428 = scmp.le.s32.totalorder 2, %s25
      // Predicated region
      $region53: #{tpu_custom_call.1} parent=5 // pred_check
        %p429 = pneg %p428
      $region54: #{tpu_custom_call.1} parent=5 // pred_check_branch
        %431 = sbr.rel (%p429) target = $region56
      $region55: #{tpu_custom_call.1} parent=5 // pred_region
        %s432 = ssub.s32 %s25, 2
        // Predicated region
        $region57: #{tpu_custom_call.1} parent=55 // pred_check
          %p433 = pneg %p148
        $region58: #{tpu_custom_call.1} parent=55 // pred_check_branch
          %435 = sbr.rel (%p433) target = $region60
        $region59: #{tpu_custom_call.1} parent=55 // pred_region
          %s436 = sand.u32 %s133, 1
          %s437 = scalar_lea.sflag [#allocation5], %s436
          %s438 = sand.u32 %s133, 1
          %s439 = smul.addr %s438, 8
          %s440 = scalar_lea.vmem [#allocation8], %s439
          %441 = dma.done %s437, 128
        $region60: #{tpu_custom_call.1} parent=55 // pred_fallthru
          _
        // Predicated region
        $region61: #{tpu_custom_call.1} parent=55 // pred_check
          %p442 = pneg %p174
        $region62: #{tpu_custom_call.1} parent=55 // pred_check_branch
          %444 = sbr.rel (%p442) target = $region64
        $region63: #{tpu_custom_call.1} parent=55 // pred_region
          %s445 = sand.u32 %s159, 1
          %s446 = scalar_lea.sflag [#allocation10], %s445
          %s447 = sand.u32 %s159, 1
          %s448 = smul.addr %s447, 8
          %s449 = scalar_lea.vmem [#allocation9], %s448
          %450 = dma.done %s446, 128
        $region64: #{tpu_custom_call.1} parent=55 // pred_fallthru
          _
      $region56: #{tpu_custom_call.1} parent=5 // pred_fallthru
        _
    $region6: #{tpu_custom_call.1} parent=1 // loop_footer
      %s29 = sadd.s32 1, %s25
    $region7: #{tpu_custom_call.1} parent=1 // loop_footer_branch
      %24 = sbr.rel target = $region3
    $region8: #{tpu_custom_call.1} parent=1 // loop_exit
      _
    %451 = vsyncpa [#allocation4], 1
    %s452 = scalar_lea.sflag [#allocation4], 1
    %453 = vsyncpa %s452, 1
    %454 = vsyncpa [#allocation7], 1
    %s455 = scalar_lea.sflag [#allocation7], 1
    %456 = vsyncpa %s455, 1
    %457 = vsyncpa [#allocation5], 1
    %s458 = scalar_lea.sflag [#allocation5], 1
    %459 = vsyncpa %s458, 1
    %460 = vsyncpa [#allocation10], 1
    %s461 = scalar_lea.sflag [#allocation10], 1
    %462 = vsyncpa %s461, 1

</llo_original>
